<compile_context>
chip_gen: v7x
topology: tpu7x:2x2x1
jax: 0.10.0
libtpu: 0.0.40
codegen_flags: <defaults>
</compile_context>

<pallas_src>
import functools
import math

import jax
import jax.numpy as jnp
from jax import lax
from jax.experimental import pallas as pl
from jax.experimental.pallas import tpu as pltpu


# ----------------------------- Pass 1: fused QKV projection ------------------

def _qkv_projection_kernel(x_ref, wqkv_ref, bqkv_ref, q_ref, k_ref, v_ref,
                           *, hidden):
    """One grid step = (one batch element, one sequence tile).

    x_ref:    [1, TS, H]  bf16 hidden-state tile
    wqkv_ref: [H, 3H]     bf16 fused (Wq*scale | Wk | Wv), [in, out] layout
    bqkv_ref: [1, 3H]     f32 fused (bq*scale | bk | bv)
    q_ref/k_ref/v_ref: [1, TS, H] bf16 projected outputs
    """
    x = x_ref[0]                                             # [TS, H] bf16
    # One lane-dense MXU matmul for all three projections; f32 accumulation,
    # f32 bias add, then one cast to the bf16 storage dtype.
    y = jnp.dot(x, wqkv_ref[...],
                preferred_element_type=jnp.float32) + bqkv_ref[...]   # [TS, 3H]
    y = y.astype(q_ref.dtype)
    q_ref[0] = y[:, :hidden]
    k_ref[0] = y[:, hidden:2 * hidden]
    v_ref[0] = y[:, 2 * hidden:]


# ----------------------------- Pass 2: attention ------------------------------

def _attention_kernel(q_ref, k_ref, v_ref, o_ref, *, num_heads, head_dim):
    """One grid step = (one batch element, one query tile).

    q_ref: [1, TQ, H]  bf16 projected queries, already scaled by 1/sqrt(d)
    k_ref: [1, S,  H]  bf16 projected keys   (block constant across query tiles)
    v_ref: [1, S,  H]  bf16 projected values (block constant across query tiles)
    o_ref: [1, TQ, H]  context output tile (f32)
    """
    q = q_ref[0]                                             # [TQ, H]
    k = k_ref[0]                                             # [S,  H]
    v = v_ref[0]                                             # [S,  H]

    for h in range(num_heads):          # static unroll; slices are static
        lo = h * head_dim
        hi = lo + head_dim
        qh = q[:, lo:hi]                # [TQ, d] bf16 (pre-scaled)
        kh = k[:, lo:hi]                # [S,  d] bf16
        vh = v[:, lo:hi]                # [S,  d] bf16

        # scores = q @ k^T as a transposed-operand contraction
        # (no materialized k^T copy / XLU transpose in the kernel).
        s = lax.dot_general(
            qh, kh,
            dimension_numbers=(((1,), (1,)), ((), ())),
            preferred_element_type=jnp.float32)              # [TQ, S] f32

        # Numerically-stable softmax in f32 (portable to v5e); normalization
        # is deferred until after probs @ v and done with an EUP approximate
        # reciprocal (separate issue slot -> nearly free).
        s = s - jnp.max(s, axis=-1, keepdims=True)
        p = jnp.exp(s)
        denom = jnp.sum(p, axis=-1, keepdims=True)           # [TQ, 1]

        ctx = jnp.dot(p.astype(jnp.bfloat16), vh,
                      preferred_element_type=jnp.float32)    # [TQ, d] f32
        ctx = ctx * pl.reciprocal(denom, approx=True)

        # Write this head's context directly into the output block; the block
        # is a full [TQ, H] VMEM buffer so the HBM writeback stays lane-dense.
        o_ref[0, :, lo:hi] = ctx.astype(o_ref.dtype)


# ----------------------------- Wrapper ----------------------------------------

def yolos_self_attention(hidden_states, wq, bq, wk, bk, wv, bv,
                         *, num_heads, q_tile=None):
    """hidden_states: [B, S, H] float32.  w*: [H, H] PyTorch [out, in] layout.
    b*: [H].  Returns context_layer [B, S, H] (heads merged)."""
    B, S, H = hidden_states.shape
    assert H % num_heads == 0
    head_dim = H // num_heads

    if q_tile is None:
        # 256 fills the v6e/v7x 256-wide MXU M dim and amortizes per-step
        # overhead; use 128 on v5e (4x128x128 MXU).
        q_tile = min(S, 256)
    assert S % q_tile == 0, "sequence length must be a multiple of the tile"

    scale = 1.0 / math.sqrt(head_dim)

    # PyTorch nn.Linear: y = x @ W.T + b -> pre-transpose to [in, out].
    # Fold 1/sqrt(d) into the *query* projection (weight and bias) so no score
    # or q scaling is needed in either kernel, and fuse Q|K|V into one
    # lane-dense [H, 3H] bf16 matrix (halves weight DMA / VMEM footprint).
    wqkv = jnp.concatenate([wq.T * scale, wk.T, wv.T], axis=1).astype(jnp.bfloat16)
    bqkv = jnp.concatenate([bq * scale, bk, bv]).reshape(1, 3 * H).astype(jnp.float32)

    # bf16 input DMA: halves the dominant HBM->VMEM stream of both passes.
    x_bf16 = hidden_states.astype(jnp.bfloat16)

    # ---------------- Pass 1: QKV projection (each row projected once) -------
    proj_kernel = functools.partial(_qkv_projection_kernel, hidden=H)
    s_tile = q_tile
    qkv_out_shape = (
        jax.ShapeDtypeStruct((B, S, H), jnp.bfloat16),   # q (pre-scaled)
        jax.ShapeDtypeStruct((B, S, H), jnp.bfloat16),   # k
        jax.ShapeDtypeStruct((B, S, H), jnp.bfloat16),   # v
    )
    q, k, v = pl.pallas_call(
        proj_kernel,
        out_shape=qkv_out_shape,
        grid_spec=pltpu.PrefetchScalarGridSpec(
            num_scalar_prefetch=0,
            grid=(B, S // s_tile),
            in_specs=[
                pl.BlockSpec((1, s_tile, H), lambda b, si: (b, si, 0)),
                # weights / biases: constant index_map -> stay VMEM-resident
                pl.BlockSpec((H, 3 * H), lambda b, si: (0, 0)),
                pl.BlockSpec((1, 3 * H), lambda b, si: (0, 0)),
            ],
            out_specs=[
                pl.BlockSpec((1, s_tile, H), lambda b, si: (b, si, 0)),
                pl.BlockSpec((1, s_tile, H), lambda b, si: (b, si, 0)),
                pl.BlockSpec((1, s_tile, H), lambda b, si: (b, si, 0)),
            ],
        ),
        compiler_params=pltpu.CompilerParams(
            dimension_semantics=("parallel", "parallel")),
    )(x_bf16, wqkv, bqkv)

    # ---------------- Pass 2: attention over query tiles ---------------------
    attn_kernel = functools.partial(_attention_kernel,
                                    num_heads=num_heads, head_dim=head_dim)
    # NOTE: the query-tile axis is last, so the full-sequence K/V blocks keep
    # the same block index between consecutive grid steps and are not re-DMA'd.
    return pl.pallas_call(
        attn_kernel,
        out_shape=jax.ShapeDtypeStruct((B, S, H), hidden_states.dtype),
        grid_spec=pltpu.PrefetchScalarGridSpec(
            num_scalar_prefetch=0,
            grid=(B, S // q_tile),
            in_specs=[
                pl.BlockSpec((1, q_tile, H), lambda b, qi: (b, qi, 0)),  # q tile
                pl.BlockSpec((1, S, H), lambda b, qi: (b, 0, 0)),        # K (resident)
                pl.BlockSpec((1, S, H), lambda b, qi: (b, 0, 0)),        # V (resident)
            ],
            out_specs=pl.BlockSpec((1, q_tile, H), lambda b, qi: (b, qi, 0)),
        ),
        compiler_params=pltpu.CompilerParams(
            dimension_semantics=("parallel", "parallel")),
    )(q, k, v)


# ----------------------------- Reference & test -------------------------------

def _reference(hidden_states, wq, bq, wk, bk, wv, bv, *, num_heads):
    """Pure-JAX f32 reference mirroring the PyTorch forward."""
    B, S, H = hidden_states.shape
    d = H // num_heads

    def proj(w, b):
        y = hidden_states @ w.T + b                      # [B, S, H]
        y = y.reshape(B, S, num_heads, d)
        return y.transpose(0, 2, 1, 3)                   # [B, nH, S, d]

    q = proj(wq, bq)
    k = proj(wk, bk)
    v = proj(wv, bv)
    scores = jnp.einsum("bhqd,bhkd->bhqk", q, k) / math.sqrt(d)
    probs = jax.nn.softmax(scores, axis=-1)
    ctx = jnp.einsum("bhqk,bhkd->bhqd", probs, v)        # [B, nH, S, d]
    return ctx.transpose(0, 2, 1, 3).reshape(B, S, H)


if __name__ == "__main__":
    # Small YOLOS-consistent config: hidden_size=32, num_attention_heads=4,
    # seq=32 with q_tile=16 so the query-tile grid axis is actually exercised.
    B, S, H = 2, 32, 32
    num_heads = 4
    q_tile = 16

    key = jax.random.PRNGKey(0)
    kx, kq, kbq, kk, kbk, kv, kbv = jax.random.split(key, 7)

    hidden_states = jax.random.normal(kx, (B, S, H), dtype=jnp.float32)
    # PyTorch nn.Linear weight layout: [out_features, in_features].
    wq = jax.random.normal(kq, (H, H), dtype=jnp.float32) * 0.1
    bq = jax.random.normal(kbq, (H,), dtype=jnp.float32) * 0.1
    wk = jax.random.normal(kk, (H, H), dtype=jnp.float32) * 0.1
    bk = jax.random.normal(kbk, (H,), dtype=jnp.float32) * 0.1
    wv = jax.random.normal(kv, (H, H), dtype=jnp.float32) * 0.1
    bv = jax.random.normal(kbv, (H,), dtype=jnp.float32) * 0.1

    out = yolos_self_attention(hidden_states, wq, bq, wk, bk, wv, bv,
                               num_heads=num_heads, q_tile=q_tile)
    out = jax.block_until_ready(out)

    ref = _reference(hidden_states, wq, bq, wk, bk, wv, bv, num_heads=num_heads)
    assert out.shape == (B, S, H)
    # bf16 MXU operands + approx reciprocal -> loosened (but tight-for-bf16)
    # tolerance; f32 accumulation keeps this comfortably within 5e-2.
    assert jnp.allclose(out, ref, atol=5e-2, rtol=5e-2), "mismatch vs reference"

    print("KERNEL_OK")
</pallas_src>

<mosaic_0001>
module attributes {stable_mosaic.version = 11 : i64} {
  func.func @_qkv_projection_kernel(%arg0: i32, %arg1: i32, %arg2: memref<1x16x32xbf16, #tpu.memory_space<vmem>>, %arg3: memref<32x96xbf16, #tpu.memory_space<vmem>>, %arg4: memref<1x96xf32, #tpu.memory_space<vmem>>, %arg5: memref<1x16x32xbf16, #tpu.memory_space<vmem>>, %arg6: memref<1x16x32xbf16, #tpu.memory_space<vmem>>, %arg7: memref<1x16x32xbf16, #tpu.memory_space<vmem>>) attributes {dimension_semantics = [#tpu.dimension_semantics<parallel>, #tpu.dimension_semantics<parallel>], iteration_bounds = array<i64: 2, 2>, scalar_prefetch = 0 : i64, scratch_operands = 0 : i64, tpu.core_type = #tpu.core_type<tc>, window_params = [{transform_indices = @transform_0, window_bounds = array<i64: 1, 16, 32>}, {pipeline_mode = #tpu.pipeline_mode<synchronous>, transform_indices = @transform_1, window_bounds = array<i64: 32, 96>}, {pipeline_mode = #tpu.pipeline_mode<synchronous>, transform_indices = @transform_2, window_bounds = array<i64: 1, 96>}, {transform_indices = @transform_3, window_bounds = array<i64: 1, 16, 32>}, {transform_indices = @transform_4, window_bounds = array<i64: 1, 16, 32>}, {transform_indices = @transform_5, window_bounds = array<i64: 1, 16, 32>}]} {
    %c0 = arith.constant 0 : index
    %c0_0 = arith.constant 0 : index
    %c0_1 = arith.constant 0 : index
    %0 = vector.load %arg2[%c0, %c0_0, %c0_1] : memref<1x16x32xbf16, #tpu.memory_space<vmem>>, vector<1x16x32xbf16>
    %1 = vector.shape_cast %0 : vector<1x16x32xbf16> to vector<16x32xbf16>
    %c0_2 = arith.constant 0 : index
    %c0_3 = arith.constant 0 : index
    %2 = vector.load %arg3[%c0_2, %c0_3] : memref<32x96xbf16, #tpu.memory_space<vmem>>, vector<32x96xbf16>
    %cst = arith.constant dense<0.000000e+00> : vector<16x96xf32>
    %3 = tpu.matmul %1, %2, %cst {dimension_numbers = #tpu.dot_dimension_numbers<[1], [0], [0], [1], [0, 0, 1, 1], [], []>} : vector<16x32xbf16>, vector<32x96xbf16>, vector<16x96xf32> -> vector<16x96xf32>
    %c0_4 = arith.constant 0 : index
    %c0_5 = arith.constant 0 : index
    %4 = vector.load %arg4[%c0_4, %c0_5] : memref<1x96xf32, #tpu.memory_space<vmem>>, vector<1x96xf32>
    %5 = vector.broadcast %4 : vector<1x96xf32> to vector<16x96xf32>
    %6 = arith.addf %3, %5 : vector<16x96xf32>
    %7 = arith.truncf %6 : vector<16x96xf32> to vector<16x96xbf16>
    %8 = vector.extract_strided_slice %7 {offsets = [0, 0], sizes = [16, 32], strides = [1, 1]} : vector<16x96xbf16> to vector<16x32xbf16>
    %c0_6 = arith.constant 0 : index
    %c0_7 = arith.constant 0 : index
    %c0_8 = arith.constant 0 : index
    %9 = vector.load %arg5[%c0_6, %c0_7, %c0_8] : memref<1x16x32xbf16, #tpu.memory_space<vmem>>, vector<1x16x32xbf16>
    %10 = vector.shape_cast %9 : vector<1x16x32xbf16> to vector<16x32xbf16>
    %11 = vector.shape_cast %8 : vector<16x32xbf16> to vector<1x16x32xbf16>
    tpu.vector_store %arg5[%c0_6, %c0_7, %c0_8], %11 {strides = array<i32>} : memref<1x16x32xbf16, #tpu.memory_space<vmem>>, vector<1x16x32xbf16>,
    %12 = vector.extract_strided_slice %7 {offsets = [0, 32], sizes = [16, 32], strides = [1, 1]} : vector<16x96xbf16> to vector<16x32xbf16>
    %c0_9 = arith.constant 0 : index
    %c0_10 = arith.constant 0 : index
    %c0_11 = arith.constant 0 : index
    %13 = vector.load %arg6[%c0_9, %c0_10, %c0_11] : memref<1x16x32xbf16, #tpu.memory_space<vmem>>, vector<1x16x32xbf16>
    %14 = vector.shape_cast %13 : vector<1x16x32xbf16> to vector<16x32xbf16>
    %15 = vector.shape_cast %12 : vector<16x32xbf16> to vector<1x16x32xbf16>
    tpu.vector_store %arg6[%c0_9, %c0_10, %c0_11], %15 {strides = array<i32>} : memref<1x16x32xbf16, #tpu.memory_space<vmem>>, vector<1x16x32xbf16>,
    %16 = vector.extract_strided_slice %7 {offsets = [0, 64], sizes = [16, 32], strides = [1, 1]} : vector<16x96xbf16> to vector<16x32xbf16>
    %c0_12 = arith.constant 0 : index
    %c0_13 = arith.constant 0 : index
    %c0_14 = arith.constant 0 : index
    %17 = vector.load %arg7[%c0_12, %c0_13, %c0_14] : memref<1x16x32xbf16, #tpu.memory_space<vmem>>, vector<1x16x32xbf16>
    %18 = vector.shape_cast %17 : vector<1x16x32xbf16> to vector<16x32xbf16>
    %19 = vector.shape_cast %16 : vector<16x32xbf16> to vector<1x16x32xbf16>
    tpu.vector_store %arg7[%c0_12, %c0_13, %c0_14], %19 {strides = array<i32>} : memref<1x16x32xbf16, #tpu.memory_space<vmem>>, vector<1x16x32xbf16>,
    return
  }
  func.func @transform_0(%arg0: i32, %arg1: i32) -> (i32, i32, i32) {
    %c0_i32 = arith.constant 0 : i32
    %c0_i32_0 = arith.constant 0 : i32
    return %arg0, %arg1, %c0_i32 : i32, i32, i32
  }
  func.func @transform_1(%arg0: i32, %arg1: i32) -> (i32, i32) {
    %c0_i32 = arith.constant 0 : i32
    %c0_i32_0 = arith.constant 0 : i32
    %c0_i32_1 = arith.constant 0 : i32
    return %c0_i32, %c0_i32_0 : i32, i32
  }
  func.func @transform_2(%arg0: i32, %arg1: i32) -> (i32, i32) {
    %c0_i32 = arith.constant 0 : i32
    %c0_i32_0 = arith.constant 0 : i32
    %c0_i32_1 = arith.constant 0 : i32
    return %c0_i32, %c0_i32_0 : i32, i32
  }
  func.func @transform_3(%arg0: i32, %arg1: i32) -> (i32, i32, i32) {
    %c0_i32 = arith.constant 0 : i32
    %c0_i32_0 = arith.constant 0 : i32
    return %arg0, %arg1, %c0_i32 : i32, i32, i32
  }
  func.func @transform_4(%arg0: i32, %arg1: i32) -> (i32, i32, i32) {
    %c0_i32 = arith.constant 0 : i32
    %c0_i32_0 = arith.constant 0 : i32
    return %arg0, %arg1, %c0_i32 : i32, i32, i32
  }
  func.func @transform_5(%arg0: i32, %arg1: i32) -> (i32, i32, i32) {
    %c0_i32 = arith.constant 0 : i32
    %c0_i32_0 = arith.constant 0 : i32
    return %arg0, %arg1, %c0_i32 : i32, i32, i32
  }
}

</mosaic_0001>

<llo_original>
// kernel: tpu_custom_call.1
$region0: #{tpu_custom_call.1}
  #allocation0 [shape = 'u32[]', space=smem, size = 0x4, offset = 0x4, fixed_abs, tag = 'smem constant byte address 0x4 - core index']
  #allocation1 [shape = 'u32[144,128]{1,0:T(1,128)}', space=vmem, size = 0x12000, scoped, tag = 'internal scratch']
  %s0 = inlined_call_operand.hbm [shape: bf16[2,32,32], index: 0, kind: input, shape index: {}]
  %s1 = inlined_call_operand.hbm [shape: bf16[32,96], index: 1, kind: input, shape index: {}]
  %s2 = inlined_call_operand.vmem [shape: f32[1,96], index: 2, kind: input, shape index: {}]
  %s3 = inlined_call_operand.hbm [shape: bf16[2,32,32], index: 3, kind: output, shape index: {0}]
  %s4 = inlined_call_operand.hbm [shape: bf16[2,32,32], index: 4, kind: output, shape index: {1}]
  %s5 = inlined_call_operand.hbm [shape: bf16[2,32,32], index: 5, kind: output, shape index: {2}]
  %6 = xla_tuple %s3, %s4, %s5
  %s7 = sld [smem:[#allocation0]]
  $region69: #{tpu_custom_call.1} parent=0
    _
  %s9 = ssub.s32 1, %s7
  %s10 = scalar_select 0, %s9, %s7
  $region1: #{tpu_custom_call.1} parent=0
    #allocation2 [shape = 'u8[8192]{0}', space=vmem, size = 0x2000, scoped, tag = 'input window, operand 0']
    #allocation3 [shape = 's32[2]{0}', space=sflag, size = 0x8, scoped, tag = 'scoped memory for tpu_custom_call.1']
    #allocation4 [shape = 's32[2]{0}', space=sflag, size = 0x8, scoped, tag = 'scoped memory for tpu_custom_call.1']
    #allocation5 [shape = 'u8[8192]{0}', space=vmem, size = 0x2000, scoped, tag = 'input window, operand 1, single buffered']
    #allocation6 [shape = 's32[1]{0}', space=sflag, size = 0x4, scoped, tag = 'scoped memory for tpu_custom_call.1']
    #allocation7 [shape = 'u8[8192]{0}', space=vmem, size = 0x2000, scoped, tag = 'output window, operand 0']
    #allocation8 [shape = 'u8[8192]{0}', space=vmem, size = 0x2000, scoped, tag = 'output window, operand 1']
    #allocation9 [shape = 's32[2]{0}', space=sflag, size = 0x8, scoped, tag = 'scoped memory for tpu_custom_call.1']
    #allocation10 [shape = 'u8[8192]{0}', space=vmem, size = 0x2000, scoped, tag = 'output window, operand 2']
    %11 = vsyncpa [#allocation3], 0
    %s12 = scalar_lea.sflag [#allocation3], 1
    %13 = vsyncpa %s12, 0
    %14 = vsyncpa [#allocation6], 0
    %15 = vsyncpa [#allocation4], 0
    %s16 = scalar_lea.sflag [#allocation4], 1
    %17 = vsyncpa %s16, 0
    %18 = vsyncpa [#allocation9], 0
    %s19 = scalar_lea.sflag [#allocation9], 1
    %20 = vsyncpa %s19, 0
    loop: start=0, step=1, limit=6
    $region2: #{tpu_custom_call.1} parent=1 // loop_pre_header
      _
    $region3: #{tpu_custom_call.1} parent=1 // loop_header
      %s22 = sphi 0, %s26
      %p23 = scmp.ge.s32.totalorder %s22, 6
      %s29 = sphi 0, %s41
      %s30 = sphi 0, %s37
      %s31 = sphi 0, %s29
      %s32 = sphi 0, %s30
      %s33 = sphi 0, %s31
      %s34 = sphi 0, %s32
      %s46 = sphi 0, %s48
      %s49 = sphi 0, %s46
      %s50 = sphi 0, %s49
      %s66 = sphi 0, %s50
      %s70 = sphi 0, %s70
      %s72 = sphi 0, %s70
      %s73 = sphi 0, %s72
      %s87 = sphi 0, %s73
      %s91 = sphi 0, %s91
      %s93 = sphi 0, %s91
      %s94 = sphi 0, %s93
      %s108 = sphi 0, %s94
      %s116 = sphi 0, %s118
      %s119 = sphi 0, %s116
      %s120 = sphi 0, %s119
      %s136 = sphi 0, %s120
      %s144 = sphi 0, %s146
      %s147 = sphi 0, %s144
      %s148 = sphi 0, %s147
      %s164 = sphi 0, %s148
      %s172 = sphi 0, %s174
      %s175 = sphi 0, %s172
      %s176 = sphi 0, %s175
      %s192 = sphi 0, %s176
    $region4: #{tpu_custom_call.1} parent=1 // loop_header_branch
      %25 = sbr.rel (%p23) target = $region8
    $region5: #{tpu_custom_call.1} parent=1 // loop_body
      %s27 = ssub.s32 %s22, 1
      %s28 = ssub.s32 %s22, 2
      %s35 = sadd.s32 1, %s30
      %p36 = scmp.ge.s32.totalorder %s35, 2
      %s37 = scalar_select %p36, 0, %s35
      %s38 = sadd.s32 1, %s29
      %s39 = scalar_select %p36, %s38, %s29
      %p40 = scmp.ge.s32.totalorder %s39, 2
      %s41 = scalar_select %p40, 0, %s39
      %s42 = ssub.s32 %s29, %s41
      %s43 = ssub.s32 %s30, %s37
      %s44 = sor.u32 %s42, %s43
      %p45 = scmp.eq.s32.totalorder %s44, 0
      %s47 = sadd.s32 %s46, 1
      %s48 = scalar_select %p45, %s46, %s47
      %p51 = pneg %p45
      %p52 = scmp.eq.s32.totalorder %s22, 3
      %p53 = por %p51, %p52
      %p54 = scmp.ne.s32.totalorder %s46, %s49
      %p55 = scmp.eq.s32.totalorder %s22, 0
      %p56 = por %p54, %p55
      %p57 = scmp.ne.s32.totalorder %s46, %s49
      %p58 = scmp.eq.s32.totalorder %s27, 3
      %p59 = por %p57, %p58
      %p60 = scmp.ne.s32.totalorder %s49, %s50
      %p61 = scmp.eq.s32.totalorder %s27, 0
      %p62 = por %p60, %p61
      %p63 = scmp.ne.s32.totalorder %s49, %s50
      %p64 = scmp.eq.s32.totalorder %s28, 3
      %p65 = por %p63, %p64
      %p67 = scmp.ne.s32.totalorder %s50, %s66
      %p68 = scmp.eq.s32.totalorder %s28, 0
      %p69 = por %p67, %p68
      %s71 = sadd.s32 %s70, 1
      %p74 = scmp.eq.s32.totalorder %s22, 3
      %p75 = scmp.ne.s32.totalorder %s70, %s72
      %p76 = scmp.eq.s32.totalorder %s22, 0
      %p77 = por %p75, %p76
      %p78 = scmp.ne.s32.totalorder %s70, %s72
      %p79 = scmp.eq.s32.totalorder %s27, 3
      %p80 = por %p78, %p79
      %p81 = scmp.ne.s32.totalorder %s72, %s73
      %p82 = scmp.eq.s32.totalorder %s27, 0
      %p83 = por %p81, %p82
      %p84 = scmp.ne.s32.totalorder %s72, %s73
      %p85 = scmp.eq.s32.totalorder %s28, 3
      %p86 = por %p84, %p85
      %p88 = scmp.ne.s32.totalorder %s73, %s87
      %p89 = scmp.eq.s32.totalorder %s28, 0
      %p90 = por %p88, %p89
      %s92 = sadd.s32 %s91, 1
      %p95 = scmp.eq.s32.totalorder %s22, 3
      %p96 = scmp.ne.s32.totalorder %s91, %s93
      %p97 = scmp.eq.s32.totalorder %s22, 0
      %p98 = por %p96, %p97
      %p99 = scmp.ne.s32.totalorder %s91, %s93
      %p100 = scmp.eq.s32.totalorder %s27, 3
      %p101 = por %p99, %p100
      %p102 = scmp.ne.s32.totalorder %s93, %s94
      %p103 = scmp.eq.s32.totalorder %s27, 0
      %p104 = por %p102, %p103
      %p105 = scmp.ne.s32.totalorder %s93, %s94
      %p106 = scmp.eq.s32.totalorder %s28, 3
      %p107 = por %p105, %p106
      %p109 = scmp.ne.s32.totalorder %s94, %s108
      %p110 = scmp.eq.s32.totalorder %s28, 0
      %p111 = por %p109, %p110
      %s112 = ssub.s32 %s29, %s41
      %s113 = ssub.s32 %s30, %s37
      %s114 = sor.u32 %s112, %s113
      %p115 = scmp.eq.s32.totalorder %s114, 0
      %s117 = sadd.s32 %s116, 1
      %s118 = scalar_select %p115, %s116, %s117
      %p121 = pneg %p115
      %p122 = scmp.eq.s32.totalorder %s22, 3
      %p123 = por %p121, %p122
      %p124 = scmp.ne.s32.totalorder %s116, %s119
      %p125 = scmp.eq.s32.totalorder %s22, 0
      %p126 = por %p124, %p125
      %p127 = scmp.ne.s32.totalorder %s116, %s119
      %p128 = scmp.eq.s32.totalorder %s27, 3
      %p129 = por %p127, %p128
      %p130 = scmp.ne.s32.totalorder %s119, %s120
      %p131 = scmp.eq.s32.totalorder %s27, 0
      %p132 = por %p130, %p131
      %p133 = scmp.ne.s32.totalorder %s119, %s120
      %p134 = scmp.eq.s32.totalorder %s28, 3
      %p135 = por %p133, %p134
      %p137 = scmp.ne.s32.totalorder %s120, %s136
      %p138 = scmp.eq.s32.totalorder %s28, 0
      %p139 = por %p137, %p138
      %s140 = ssub.s32 %s29, %s41
      %s141 = ssub.s32 %s30, %s37
      %s142 = sor.u32 %s140, %s141
      %p143 = scmp.eq.s32.totalorder %s142, 0
      %s145 = sadd.s32 %s144, 1
      %s146 = scalar_select %p143, %s144, %s145
      %p149 = pneg %p143
      %p150 = scmp.eq.s32.totalorder %s22, 3
      %p151 = por %p149, %p150
      %p152 = scmp.ne.s32.totalorder %s144, %s147
      %p153 = scmp.eq.s32.totalorder %s22, 0
      %p154 = por %p152, %p153
      %p155 = scmp.ne.s32.totalorder %s144, %s147
      %p156 = scmp.eq.s32.totalorder %s27, 3
      %p157 = por %p155, %p156
      %p158 = scmp.ne.s32.totalorder %s147, %s148
      %p159 = scmp.eq.s32.totalorder %s27, 0
      %p160 = por %p158, %p159
      %p161 = scmp.ne.s32.totalorder %s147, %s148
      %p162 = scmp.eq.s32.totalorder %s28, 3
      %p163 = por %p161, %p162
      %p165 = scmp.ne.s32.totalorder %s148, %s164
      %p166 = scmp.eq.s32.totalorder %s28, 0
      %p167 = por %p165, %p166
      %s168 = ssub.s32 %s29, %s41
      %s169 = ssub.s32 %s30, %s37
      %s170 = sor.u32 %s168, %s169
      %p171 = scmp.eq.s32.totalorder %s170, 0
      %s173 = sadd.s32 %s172, 1
      %s174 = scalar_select %p171, %s172, %s173
      %p177 = pneg %p171
      %p178 = scmp.eq.s32.totalorder %s22, 3
      %p179 = por %p177, %p178
      %p180 = scmp.ne.s32.totalorder %s172, %s175
      %p181 = scmp.eq.s32.totalorder %s22, 0
      %p182 = por %p180, %p181
      %p183 = scmp.ne.s32.totalorder %s172, %s175
      %p184 = scmp.eq.s32.totalorder %s27, 3
      %p185 = por %p183, %p184
      %p186 = scmp.ne.s32.totalorder %s175, %s176
      %p187 = scmp.eq.s32.totalorder %s27, 0
      %p188 = por %p186, %p187
      %p189 = scmp.ne.s32.totalorder %s175, %s176
      %p190 = scmp.eq.s32.totalorder %s28, 3
      %p191 = por %p189, %p190
      %p193 = scmp.ne.s32.totalorder %s176, %s192
      %p194 = scmp.eq.s32.totalorder %s28, 0
      %p195 = por %p193, %p194
      %p196 = scmp.le.s32.totalorder 1, %s22
      %p197 = scmp.lt.s32.totalorder %s22, 5
      %p198 = pnand %p196, %p197
      %p199 = pneg %p198
      // Predicated region
      $region9: #{tpu_custom_call.1} parent=5 // pred_check
        _
      $region10: #{tpu_custom_call.1} parent=5 // pred_check_branch
        %201 = sbr.rel (%p198) target = $region12
      $region11: #{tpu_custom_call.1} parent=5 // pred_region
        %s202 = ssub.s32 %s22, 1
        // Predicated region
        $region13: #{tpu_custom_call.1} parent=11 // pred_check
          %p203 = pneg %p83
        $region14: #{tpu_custom_call.1} parent=11 // pred_check_branch
          %205 = sbr.rel (%p203) target = $region16
        $region15: #{tpu_custom_call.1} parent=11 // pred_region
          %s207 = ssub.s32 256, 256
          %208 = vsyncadd [#allocation6], %s207
          %s209 = sshll.u32 [#allocation5], 4
          %s210 = int_to_ptr.vmem [resolvable:$true] %s209
          %215 = dma.hbm_to_vmem [thread:$0]  %s1, 256, %s210, [#allocation6], 64, 64, 4
        $region16: #{tpu_custom_call.1} parent=11 // pred_fallthru
          _
        // Predicated region
        $region17: #{tpu_custom_call.1} parent=11 // pred_check
          %p216 = pneg %p104
        $region18: #{tpu_custom_call.1} parent=11 // pred_check_branch
          %218 = sbr.rel (%p216) target = $region20
        $region19: #{tpu_custom_call.1} parent=11 // pred_region
          _
        $region20: #{tpu_custom_call.1} parent=11 // pred_fallthru
          _
      $region12: #{tpu_custom_call.1} parent=5 // pred_fallthru
        _
      %p219 = scmp.lt.s32.totalorder %s22, 4
      // Predicated region
      $region21: #{tpu_custom_call.1} parent=5 // pred_check
        %p220 = pneg %p219
      $region22: #{tpu_custom_call.1} parent=5 // pred_check_branch
        %222 = sbr.rel (%p220) target = $region24
      $region23: #{tpu_custom_call.1} parent=5 // pred_region
        // Predicated region
        $region25: #{tpu_custom_call.1} parent=23 // pred_check
          %p223 = pneg %p56
        $region26: #{tpu_custom_call.1} parent=23 // pred_check_branch
          %225 = sbr.rel (%p223) target = $region28
        $region27: #{tpu_custom_call.1} parent=23 // pred_region
          %s226 = sand.u32 %s46, 1
          %s227 = scalar_lea.sflag [#allocation3], %s226
          %s228 = sand.u32 %s46, 1
          %s229 = smul.addr %s228, 8
          %s230 = scalar_lea.vmem [#allocation2], %s229
          %s231 = smul.u32 2, %s30
          %s233 = ssub.s32 128, 128
          %234 = vsyncadd %s227, %s233
          %s235 = smul.addr %s29, 4
          %s236 = sadd.s32 %s231, %s235
          %s237 = smul.addr %s236, 64
          %s238 = scalar_lea.hbm %s0, %s237
          %s239 = sshll.u32 %s230, 4
          %s240 = int_to_ptr.vmem [resolvable:$true] %s239
          %245 = dma.hbm_to_vmem [thread:$0]  %s238, 128, %s240, %s227, 64, 64, 4
        $region28: #{tpu_custom_call.1} parent=23 // pred_fallthru
          _
      $region24: #{tpu_custom_call.1} parent=5 // pred_fallthru
        _
      %p246 = scmp.le.s32.totalorder 1, %s22
      %p247 = scmp.lt.s32.totalorder %s22, 5
      %p248 = pnand %p246, %p247
      %p249 = pneg %p248
      // Predicated region
      $region29: #{tpu_custom_call.1} parent=5 // pred_check
        _
      $region30: #{tpu_custom_call.1} parent=5 // pred_check_branch
        %251 = sbr.rel (%p248) target = $region32
      $region31: #{tpu_custom_call.1} parent=5 // pred_region
        %s252 = ssub.s32 %s22, 1
        %s253 = sand.u32 %s49, 1
        %s254 = scalar_lea.sflag [#allocation3], %s253
        %s255 = sand.u32 %s49, 1
        %s256 = smul.addr %s255, 8
        %s257 = scalar_lea.vmem [#allocation2], %s256
        // Predicated region
        $region33: #{tpu_custom_call.1} parent=31 // pred_check
          %p258 = pneg %p62
        $region34: #{tpu_custom_call.1} parent=31 // pred_check_branch
          %260 = sbr.rel (%p258) target = $region36
        $region35: #{tpu_custom_call.1} parent=31 // pred_region
          %261 = dma.done %s254, 128
        $region36: #{tpu_custom_call.1} parent=31 // pred_fallthru
          _
        // Predicated region
        $region37: #{tpu_custom_call.1} parent=31 // pred_check
          %p262 = pneg %p83
        $region38: #{tpu_custom_call.1} parent=31 // pred_check_branch
          %264 = sbr.rel (%p262) target = $region40
        $region39: #{tpu_custom_call.1} parent=31 // pred_region
          %265 = dma.done [#allocation6], 256
        $region40: #{tpu_custom_call.1} parent=31 // pred_fallthru
          _
        %s266 = sand.u32 %s49, 1
        %s267 = scalar_lea.sflag [#allocation3], %s266
        %s268 = sand.u32 %s49, 1
        %s269 = smul.addr %s268, 8
        %s270 = scalar_lea.vmem [#allocation2], %s269
        %p271 = pneg %p62
        %p272 = pneg %p59
        %p273 = pneg %p83
        %p274 = pneg %p80
        %p275 = pneg %p104
        %p276 = pneg %p101
        %p277 = pneg %p132
        %p278 = pneg %p129
        %s279 = sand.u32 %s119, 1
        %s280 = scalar_lea.sflag [#allocation4], %s279
        %s281 = sand.u32 %s119, 1
        %s282 = smul.addr %s281, 8
        %s283 = scalar_lea.vmem [#allocation7], %s282
        %p284 = pneg %p160
        %p285 = pneg %p157
        %s286 = sand.u32 %s27, 1
        %s287 = scalar_lea.sflag [#allocation9], %s286
        %s288 = sand.u32 %s147, 1
        %s289 = smul.addr %s288, 8
        %s290 = scalar_lea.vmem [#allocation8], %s289
        %p291 = pneg %p188
        %p292 = pneg %p185
        %s293 = sand.u32 %s27, 1
        %s294 = scalar_lea.sflag [#allocation9], %s293
        %s295 = sand.u32 %s175, 1
        %s296 = smul.addr %s295, 8
        %s297 = scalar_lea.vmem [#allocation10], %s296
        %s298 = smul.u32 2, %s32
        %s299 = smul.u32 2, %s32
        %s300 = smul.u32 2, %s32
        %s301 = smul.u32 2, %s32
        %v303 = vld [vmem:[%s257] sm:$0xf]
        %v304 = vld [vmem:[%s257 + $0x4] sm:$0xf]
        %v305 = vld [vmem:[#allocation5] sm:$0xf]
        %v306 = vld [vmem:[#allocation5 + $0x4] sm:$0xf]
        %v307 = vld [vmem:[#allocation5 + $0x8] sm:$0xf]
        %v308 = vld [vmem:[#allocation5 + $0xc] sm:$0xf]
        %v309 = vld [vmem:[%s2] sm:$0x1]
        %v311 = vlaneseq
        %v312 = vshrl.u32 %v311, 7
        %v313 = vsub.s32 0, %v312
        %v314 = vrot.slane %v309, %v313
        %v318 = vunpack.c.l.b16 %v303
        %v319 = vunpack.c.l.b16 %v304
        %v320 = vpack.c.b16 %v319, %v318
        %v325 = vunpack.c.l.b16 %v305
        %v326 = vunpack.c.l.b16 %v306
        %v327 = vunpack.c.l.b16 %v307
        %v328 = vunpack.c.l.b16 %v308
        %v329 = vpack.c.b16 %v326, %v325
        %v330 = vpack.c.b16 %v328, %v327
        %vm333 = vcmask 261120
        %v335 = vsel %vm333, %v320, 0
        %337 = vmatprep.subr.bf16.mxu0 0
        %338 = vmatpush1.bf16.msra.mxu0 %v329
        %339 = vmatprep.subr.bf16.mxu0 0
        %340 = vmatpush1.bf16.msra.mxu0 %v330
        %341 = vmatprep.subr.bf16.mxu0 0
        %342 = vmatpush1.bf16.msra.mxu0 0
        %343 = vmatprep.subr.bf16.mxu0 0
        %344 = vmatpush1.bf16.msra.mxu0 0
        %345 = vmatprep.subr.bf16.mxu0 0
        %346 = vmatpush1.bf16.msra.mxu0 0
        %347 = vmatprep.subr.bf16.mxu0 0
        %348 = vmatpush1.bf16.msra.mxu0 0
        %349 = vmatprep.subr.bf16.mxu0 0
        %350 = vmatpush1.bf16.msra.mxu0 0
        %351 = vmatprep.subr.bf16.mxu0 0
        %352 = vmatpush1.bf16.msra.mxu0 0
        %353 = vmatprep.subr.bf16.mxu0 0
        %354 = vmatpush1.bf16.msra.mxu0 0
        %355 = vmatprep.subr.bf16.mxu0 0
        %356 = vmatpush1.bf16.msra.mxu0 0
        %357 = vmatprep.subr.bf16.mxu0 0
        %358 = vmatpush1.bf16.msra.mxu0 0
        %359 = vmatprep.subr.bf16.mxu0 0
        %360 = vmatpush1.bf16.msra.mxu0 0
        %361 = vmatprep.subr.bf16.mxu0 0
        %362 = vmatpush1.bf16.msra.mxu0 0
        %363 = vmatprep.subr.bf16.mxu0 0
        %364 = vmatpush1.bf16.msra.mxu0 0
        %365 = vmatprep.subr.bf16.mxu0 0
        %366 = vmatpush1.bf16.msra.mxu0 0
        %367 = vmatprep.subr.bf16.mxu0 0
        %368 = vmatpush1.bf16.msra.mxu0 0
        %369 = vmatprep.mubr.bf16.mxu0 0
        %370 = vmatmul.mubr.bf16.gmra.mrb[0].mxu0 %v335
        %v371 = vpop.f32.mrb[0].mxu0
        %v372 = vadd.f32 %v314, %v371
        %v373 = vpop.f32.mrb[0].mxu0
        %v374 = vpop.f32.mrb[0].mxu0
        %v375 = vadd.f32 %v314, %v374
        %v376 = vpop.f32.mrb[0].mxu0
        %377 = vdwg.mxu0
        %v378 = vpack.c.bf16 %v375, %v372
        %v380 = vunpack.c.l.b16 %v378
        %v381 = vunpack.c.h.b16 %v378
        %v382 = vpack.c.b16 %v380, %v380
        %v383 = vpack.c.b16 %v381, %v381
        %vm386 = vcmask 257024
        %387 = vst.msk [vmem:[%s283] sm:$0xf] %vm386, %v382
        %388 = vst.msk [vmem:[%s283 + $0x4] sm:$0xf] %vm386, %v383
        %389 = vrot.lane.b32.xlu0 %v382, 96
        %v390 = vpop.permute.xlu0 %389
        %391 = vrot.lane.b32.xlu0 %v383, 96
        %v392 = vpop.permute.xlu0 %391
        %395 = vst.msk [vmem:[%s290] sm:$0xf] %vm386, %v390
        %396 = vst.msk [vmem:[%s290 + $0x4] sm:$0xf] %vm386, %v392
        %397 = vrot.lane.b32.xlu0 %v382, 64
        %v398 = vpop.permute.xlu0 %397
        %399 = vrot.lane.b32.xlu0 %v383, 64
        %v400 = vpop.permute.xlu0 %399
        %403 = vst.msk [vmem:[%s297] sm:$0xf] %vm386, %v398
        %404 = vst.msk [vmem:[%s297 + $0x4] sm:$0xf] %vm386, %v400
        %s405 = sand.u32 %s119, 1
        %s406 = scalar_lea.sflag [#allocation4], %s405
        %s407 = sand.u32 %s119, 1
        %s408 = smul.addr %s407, 8
        %s409 = scalar_lea.vmem [#allocation7], %s408
        %s410 = sand.u32 %s27, 1
        %s411 = scalar_lea.sflag [#allocation9], %s410
        %s412 = sand.u32 %s147, 1
        %s413 = smul.addr %s412, 8
        %s414 = scalar_lea.vmem [#allocation8], %s413
        %s415 = sand.u32 %s27, 1
        %s416 = scalar_lea.sflag [#allocation9], %s415
        %s417 = sand.u32 %s175, 1
        %s418 = smul.addr %s417, 8
        %s419 = scalar_lea.vmem [#allocation10], %s418
        // Predicated region
        $region41: #{tpu_custom_call.1} parent=31 // pred_check
          %p420 = pneg %p129
        $region42: #{tpu_custom_call.1} parent=31 // pred_check_branch
          %422 = sbr.rel (%p420) target = $region44
        $region43: #{tpu_custom_call.1} parent=31 // pred_region
          %s423 = smul.u32 2, %s32
          %s425 = ssub.s32 128, 128
          %426 = vsyncadd %s406, %s425
          %s427 = smul.addr %s31, 4
          %s428 = sadd.s32 %s423, %s427
          %s429 = smul.addr %s428, 64
          %s430 = scalar_lea.hbm %s3, %s429
          %s431 = sshll.u32 %s409, 4
          %s432 = int_to_ptr.vmem [resolvable:$true] %s431
          %437 = dma.vmem_to_hbm [thread:$0]  %s432, 128, %s430, %s406, 64, 64, 4
        $region44: #{tpu_custom_call.1} parent=31 // pred_fallthru
          _
        // Predicated region
        $region45: #{tpu_custom_call.1} parent=31 // pred_check
          %p438 = pneg %p157
        $region46: #{tpu_custom_call.1} parent=31 // pred_check_branch
          %440 = sbr.rel (%p438) target = $region48
        $region47: #{tpu_custom_call.1} parent=31 // pred_region
          %s441 = smul.u32 2, %s32
          %s443 = ssub.s32 128, 128
          %444 = vsyncadd %s411, %s443
          %s445 = smul.addr %s31, 4
          %s446 = sadd.s32 %s441, %s445
          %s447 = smul.addr %s446, 64
          %s448 = scalar_lea.hbm %s4, %s447
          %s449 = sshll.u32 %s414, 4
          %s450 = int_to_ptr.vmem [resolvable:$true] %s449
          %455 = dma.vmem_to_hbm [thread:$0]  %s450, 128, %s448, %s411, 64, 64, 4
        $region48: #{tpu_custom_call.1} parent=31 // pred_fallthru
          _
        // Predicated region
        $region49: #{tpu_custom_call.1} parent=31 // pred_check
          %p456 = pneg %p185
        $region50: #{tpu_custom_call.1} parent=31 // pred_check_branch
          %458 = sbr.rel (%p456) target = $region52
        $region51: #{tpu_custom_call.1} parent=31 // pred_region
          %s459 = smul.u32 2, %s32
          %s461 = ssub.s32 128, 128
          %462 = vsyncadd %s416, %s461
          %s463 = smul.addr %s31, 4
          %s464 = sadd.s32 %s459, %s463
          %s465 = smul.addr %s464, 64
          %s466 = scalar_lea.hbm %s5, %s465
          %s467 = sshll.u32 %s419, 4
          %s468 = int_to_ptr.vmem [resolvable:$true] %s467
          %473 = dma.vmem_to_hbm [thread:$0]  %s468, 128, %s466, %s416, 64, 64, 4
        $region52: #{tpu_custom_call.1} parent=31 // pred_fallthru
          _
      $region32: #{tpu_custom_call.1} parent=5 // pred_fallthru
        _
      %p474 = scmp.le.s32.totalorder 2, %s22
      // Predicated region
      $region53: #{tpu_custom_call.1} parent=5 // pred_check
        %p475 = pneg %p474
      $region54: #{tpu_custom_call.1} parent=5 // pred_check_branch
        %477 = sbr.rel (%p475) target = $region56
      $region55: #{tpu_custom_call.1} parent=5 // pred_region
        %s478 = ssub.s32 %s22, 2
        // Predicated region
        $region57: #{tpu_custom_call.1} parent=55 // pred_check
          %p479 = pneg %p135
        $region58: #{tpu_custom_call.1} parent=55 // pred_check_branch
          %481 = sbr.rel (%p479) target = $region60
        $region59: #{tpu_custom_call.1} parent=55 // pred_region
          %s482 = sand.u32 %s120, 1
          %s483 = scalar_lea.sflag [#allocation4], %s482
          %s484 = sand.u32 %s120, 1
          %s485 = smul.addr %s484, 8
          %s486 = scalar_lea.vmem [#allocation7], %s485
          %487 = dma.done %s483, 128
        $region60: #{tpu_custom_call.1} parent=55 // pred_fallthru
          _
        // Predicated region
        $region61: #{tpu_custom_call.1} parent=55 // pred_check
          %p488 = pneg %p163
        $region62: #{tpu_custom_call.1} parent=55 // pred_check_branch
          %490 = sbr.rel (%p488) target = $region64
        $region63: #{tpu_custom_call.1} parent=55 // pred_region
          %s491 = sand.u32 %s28, 1
          %s492 = scalar_lea.sflag [#allocation9], %s491
          %s493 = sand.u32 %s148, 1
          %s494 = smul.addr %s493, 8
          %s495 = scalar_lea.vmem [#allocation8], %s494
          %496 = dma.done %s492, 128
        $region64: #{tpu_custom_call.1} parent=55 // pred_fallthru
          _
        // Predicated region
        $region65: #{tpu_custom_call.1} parent=55 // pred_check
          %p497 = pneg %p191
        $region66: #{tpu_custom_call.1} parent=55 // pred_check_branch
          %499 = sbr.rel (%p497) target = $region68
        $region67: #{tpu_custom_call.1} parent=55 // pred_region
          %s500 = sand.u32 %s28, 1
          %s501 = scalar_lea.sflag [#allocation9], %s500
          %s502 = sand.u32 %s176, 1
          %s503 = smul.addr %s502, 8
          %s504 = scalar_lea.vmem [#allocation10], %s503
          %505 = dma.done %s501, 128
        $region68: #{tpu_custom_call.1} parent=55 // pred_fallthru
          _
      $region56: #{tpu_custom_call.1} parent=5 // pred_fallthru
        _
    $region6: #{tpu_custom_call.1} parent=1 // loop_footer
      %s26 = sadd.s32 1, %s22
    $region7: #{tpu_custom_call.1} parent=1 // loop_footer_branch
      %21 = sbr.rel target = $region3
    $region8: #{tpu_custom_call.1} parent=1 // loop_exit
      _
    %506 = vsyncpa [#allocation3], 1
    %s507 = scalar_lea.sflag [#allocation3], 1
    %508 = vsyncpa %s507, 1
    %509 = vsyncpa [#allocation6], 1
    %510 = vsyncpa [#allocation4], 1
    %s511 = scalar_lea.sflag [#allocation4], 1
    %512 = vsyncpa %s511, 1
    %513 = vsyncpa [#allocation9], 1
    %s514 = scalar_lea.sflag [#allocation9], 1
    %515 = vsyncpa %s514, 1

</llo_original>
